<compile_context>
chip_gen: v7x
topology: tpu7x:2x2x1
jax: 0.10.0
libtpu: 0.0.40
codegen_flags: <defaults>
</compile_context>

<pallas_src>
import jax
import jax.numpy as jnp
import numpy as np
from jax.experimental import pallas as pl
from jax.experimental.pallas import tpu as pltpu

# ----- module hyper-parameters (consistent with the torch __init__) -----
MEMORY_SIZE = 16
INPUT_DIM = 4
OUTPUT_DIM = 8
NUM_NODES = 16
BATCH = 2
H1, H2 = 32, 5               # hidden sizes of the generator MLPs (fixed in torch code)
H2P = 8                      # H2 padded to a clean sublane boundary
PW = 128                     # lane-padded width used for all packed weights / activations
OW = INPUT_DIM * OUTPUT_DIM  # 32  (weight-generator output width)
OB = OUTPUT_DIM              # 8   (bias-generator output width)
CONST1 = 127                 # reserved constant-1 carrier lane (bias folding)

TM_MAX = 2048                # max rows per grid step
SINGLE_STEP_MAX = 1024       # below this: one big tile / single grid step

assert MEMORY_SIZE % 8 == 0
assert 2 * H1 <= CONST1 and OW + OB <= CONST1 and H2P + H2 <= CONST1

# ----- row offsets inside the single packed (bf16) parameter slab -----
R_W1 = 0
R_W2 = R_W1 + MEMORY_SIZE      # 16
R_W3 = R_W2 + PW               # 144
R_B1 = R_W3 + PW               # 272  (16-row aligned for bf16 sublane tiling)
PACK_ROWS = R_B1 + 16          # 288


def _fused_param_gen_kernel(mem_ref, p_ref, out_ref):
    m = mem_ref[...].astype(jnp.bfloat16)                   # [TM, MEMORY_SIZE]

    # static slices of the resident packed parameter block (free views)
    w1 = p_ref[R_W1:R_W1 + MEMORY_SIZE, :]                  # [16, 128]  bf16
    w2 = p_ref[R_W2:R_W2 + PW, :]                           # [128, 128] block-diag, row 127 = b2, [127,127] = 1
    w3 = p_ref[R_W3:R_W3 + PW, :]                           # [128, 128] block-diag, row 127 = b3
    b1 = p_ref[R_B1:R_B1 + 1, :].astype(jnp.float32)        # [1, 128],  lane 127 == 1

    # layer 1 (both branches at once); lane 127 of h1 becomes the constant-1 carrier
    h1 = jnp.maximum(jnp.dot(m, w1, preferred_element_type=jnp.float32) + b1, 0.0)
    # layers 2 / 3: biases ride in row 127 of w2 / w3 via the constant-1 lane -> no adds
    h2 = jnp.maximum(
        jnp.dot(h1.astype(jnp.bfloat16), w2, preferred_element_type=jnp.float32), 0.0)
    out = jnp.dot(h2.astype(jnp.bfloat16), w3, preferred_element_type=jnp.float32)
    out_ref[...] = out.astype(out_ref.dtype)                 # lane-dense [TM, 128] store


def pack_params(params):
    """Pack the 12 generator tensors into one bf16 [PACK_ROWS, 128] slab.

    Done ONCE per parameter update (pure numpy), not in the per-forward path.
    """
    p = [np.asarray(t, np.float32) for t in params]
    (w1w, b1w, w2w, b2w, w3w, b3w, w1b, b1b, w2b, b2b, w3b, b3b) = p

    W1 = np.zeros((MEMORY_SIZE, PW), np.float32)
    W1[:, 0:H1] = w1w
    W1[:, H1:2 * H1] = w1b

    B1 = np.zeros((PACK_ROWS - R_B1, PW), np.float32)        # only row 0 is read
    B1[0, 0:H1] = b1w.reshape(-1)
    B1[0, H1:2 * H1] = b1b.reshape(-1)
    B1[0, CONST1] = 1.0                                       # constant-1 carrier lane

    W2 = np.zeros((PW, PW), np.float32)
    W2[0:H1, 0:H2] = w2w
    W2[H1:2 * H1, H2P:H2P + H2] = w2b
    W2[CONST1, 0:H2] = b2w.reshape(-1)                        # folded layer-2 biases
    W2[CONST1, H2P:H2P + H2] = b2b.reshape(-1)
    W2[CONST1, CONST1] = 1.0                                  # keep carrier lane == 1

    W3 = np.zeros((PW, PW), np.float32)
    W3[0:H2, 0:OW] = w3w
    W3[H2P:H2P + H2, OW:OW + OB] = w3b
    W3[CONST1, 0:OW] = b3w.reshape(-1)                        # folded layer-3 biases
    W3[CONST1, OW:OW + OB] = b3b.reshape(-1)

    packed = np.concatenate([W1, W2, W3, B1], axis=0)
    assert packed.shape == (PACK_ROWS, PW)
    return jnp.asarray(packed, dtype=jnp.bfloat16)


def _round_up(v, m):
    return ((v + m - 1) // m) * m


def _choose_row_tile(M):
    if M <= SINGLE_STEP_MAX:
        # tiny/medium problems are launch-overhead bound: one big tile, single step
        return max(8, _round_up(M, 8))
    # otherwise guarantee >= 2 grid steps (v7x megacore occupancy), capped at TM_MAX
    steps = max(2, -(-M // TM_MAX))
    return _round_up(-(-M // steps), 8)


def parameter_generator_dynamic(x, memory, packed_params):
    """Dynamic branch of ParameterGenerator.forward.

    x:             [B, C, N, T]      (only x.shape[0] is used, as in the torch module)
    memory:        [B, N, memory_size]
    packed_params: bf16 [PACK_ROWS, 128] slab from pack_params()
    returns (weights [B, N, input_dim, output_dim], biases [B, N, output_dim])
    """
    B = x.shape[0]
    Bm, Nm, F = memory.shape
    assert F == MEMORY_SIZE
    M = Bm * Nm

    TM = _choose_row_tile(M)
    Mp = _round_up(max(M, TM), TM)

    mem2d = memory.reshape(M, F)                  # native dtype; kernel casts to bf16
    if Mp > M:
        mem2d = jnp.pad(mem2d, ((0, Mp - M), (0, 0)))

    steps = Mp // TM
    sem = ("parallel",) if steps > 1 else ("arbitrary",)

    out = pl.pallas_call(
        _fused_param_gen_kernel,
        out_shape=jax.ShapeDtypeStruct((Mp, PW), jnp.float32),
        grid=(steps,),
        in_specs=[
            pl.BlockSpec((TM, F), lambda i: (i, 0)),              # memory row tile
            # resident packed params (constant block index -> copied once, never re-DMAd)
            # NOTE: pipeline_mode=pl.Buffered(1) would also drop the dead second buffer
            # (~72 KiB); left at the default to stay conservative on compile support.
            pl.BlockSpec((PACK_ROWS, PW), lambda i: (0, 0)),
        ],
        out_specs=pl.BlockSpec((TM, PW), lambda i: (i, 0)),       # lane-dense output slab
        compiler_params=pltpu.CompilerParams(dimension_semantics=sem),
    )(mem2d, packed_params)

    out = out[:M]
    # Downstream consumers inside the same jit can index the [M, 128] slab directly
    # (cols 0:32 = weights, 32:40 = biases) to avoid materializing compacted copies.
    weights = out[:, :OW].reshape(B, -1, INPUT_DIM, OUTPUT_DIM)
    biases = out[:, OW:OW + OB].reshape(B, -1, OUTPUT_DIM)
    return weights, biases


def parameter_generator_static(static_weights, static_biases):
    # non-dynamic branch: forward just returns the learned parameters (no compute,
    # so there is nothing to put in a kernel).
    return static_weights, static_biases


def _init_params(key):
    """Deterministic init of the two generator MLPs (weights stored as (in, out))."""
    ks = jax.random.split(key, 12)

    def lin(kw, kb, fan_in, fan_out):
        bound = 1.0 / np.sqrt(fan_in)
        w = jax.random.uniform(kw, (fan_in, fan_out), jnp.float32, -bound, bound)
        b = jax.random.uniform(kb, (1, fan_out), jnp.float32, -bound, bound)
        return w, b

    w1w, b1w = lin(ks[0], ks[1], MEMORY_SIZE, H1)
    w2w, b2w = lin(ks[2], ks[3], H1, H2)
    w3w, b3w = lin(ks[4], ks[5], H2, INPUT_DIM * OUTPUT_DIM)
    w1b, b1b = lin(ks[6], ks[7], MEMORY_SIZE, H1)
    w2b, b2b = lin(ks[8], ks[9], H1, H2)
    w3b, b3b = lin(ks[10], ks[11], H2, OUTPUT_DIM)
    return (w1w, b1w, w2w, b2w, w3w, b3w, w1b, b1b, w2b, b2b, w3b, b3b)


def _reference(memory, params, *, bf16=False):
    """Pure-JAX reference. bf16=True mirrors the kernel's matmul-input casts."""
    (w1w, b1w, w2w, b2w, w3w, b3w, w1b, b1b, w2b, b2b, w3b, b3b) = params
    B = memory.shape[0]
    m = memory.reshape(-1, MEMORY_SIZE).astype(jnp.float32)

    def cast(v):
        return v.astype(jnp.bfloat16) if bf16 else v

    def mlp(w1, b1, w2, b2, w3, b3):
        h = jnp.dot(cast(m), cast(w1), preferred_element_type=jnp.float32)
        h = jnp.maximum(h + cast(b1).astype(jnp.float32), 0.0)
        h = jnp.dot(cast(h), cast(w2), preferred_element_type=jnp.float32)
        h = jnp.maximum(h + cast(b2).astype(jnp.float32), 0.0)
        h = jnp.dot(cast(h), cast(w3), preferred_element_type=jnp.float32)
        return h + cast(b3).astype(jnp.float32)

    wf = mlp(w1w, b1w, w2w, b2w, w3w, b3w)
    bf_ = mlp(w1b, b1b, w2b, b2b, w3b, b3b)
    return (wf.reshape(B, -1, INPUT_DIM, OUTPUT_DIM),
            bf_.reshape(B, -1, OUTPUT_DIM))


if __name__ == "__main__":
    key = jax.random.PRNGKey(0)
    k_x, k_mem, k_par = jax.random.split(key, 3)

    params = _init_params(k_par)
    packed = pack_params(params)                 # packed ONCE, outside the forward path

    fwd = jax.jit(parameter_generator_dynamic)

    # ---- default small case: B=2, N=16 (single grid step) ----
    x = jax.random.normal(k_x, (BATCH, INPUT_DIM, NUM_NODES, 12), jnp.float32)
    memory = jax.random.normal(k_mem, (BATCH, NUM_NODES, MEMORY_SIZE), jnp.float32)

    weights, biases = fwd(x, memory, packed)
    jax.block_until_ready((weights, biases))

    # tight check vs a bf16-matched reference (verifies packing / bias folding),
    # loose check vs the pure-f32 reference (bounds bf16 degradation).
    w_m, b_m = _reference(memory, params, bf16=True)
    w_f, b_f = _reference(memory, params, bf16=False)
    np.testing.assert_allclose(np.asarray(weights), np.asarray(w_m), rtol=2e-2, atol=2e-2)
    np.testing.assert_allclose(np.asarray(biases), np.asarray(b_m), rtol=2e-2, atol=2e-2)
    np.testing.assert_allclose(np.asarray(weights), np.asarray(w_f), rtol=1e-1, atol=1e-1)
    np.testing.assert_allclose(np.asarray(biases), np.asarray(b_f), rtol=1e-1, atol=1e-1)
    assert weights.shape == (BATCH, NUM_NODES, INPUT_DIM, OUTPUT_DIM)
    assert biases.shape == (BATCH, NUM_NODES, OUTPUT_DIM)

    # ---- larger case: exercises the multi-step (>=2 parallel steps) tiling path ----
    N_BIG = 2048
    mem_big = jax.random.normal(jax.random.PRNGKey(1),
                                (BATCH, N_BIG, MEMORY_SIZE), jnp.float32)
    x_big = jnp.zeros((BATCH, INPUT_DIM, N_BIG, 12), jnp.float32)
    w_big, b_big = fwd(x_big, mem_big, packed)
    jax.block_until_ready((w_big, b_big))
    w_bm, b_bm = _reference(mem_big, params, bf16=True)
    np.testing.assert_allclose(np.asarray(w_big), np.asarray(w_bm), rtol=2e-2, atol=2e-2)
    np.testing.assert_allclose(np.asarray(b_big), np.asarray(b_bm), rtol=2e-2, atol=2e-2)
    assert w_big.shape == (BATCH, N_BIG, INPUT_DIM, OUTPUT_DIM)
    assert b_big.shape == (BATCH, N_BIG, OUTPUT_DIM)

    print("KERNEL_OK")
</pallas_src>

<mosaic_0001>
module attributes {stable_mosaic.version = 11 : i64} {
  func.func @_fused_param_gen_kernel(%arg0: i32, %arg1: memref<32x16xf32, #tpu.memory_space<vmem>>, %arg2: memref<288x128xbf16, #tpu.memory_space<vmem>>, %arg3: memref<32x128xf32, #tpu.memory_space<vmem>>) attributes {dimension_semantics = [#tpu.dimension_semantics<arbitrary>], iteration_bounds = array<i64: 1>, scalar_prefetch = 0 : i64, scratch_operands = 0 : i64, tpu.core_type = #tpu.core_type<tc>, window_params = [{transform_indices = @transform_0, window_bounds = array<i64: 32, 16>}, {pipeline_mode = #tpu.pipeline_mode<synchronous>, transform_indices = @transform_1, window_bounds = array<i64: 288, 128>}, {transform_indices = @transform_2, window_bounds = array<i64: 32, 128>}]} {
    %c0 = arith.constant 0 : index
    %c0_0 = arith.constant 0 : index
    %0 = vector.load %arg1[%c0, %c0_0] : memref<32x16xf32, #tpu.memory_space<vmem>>, vector<32x16xf32>
    %1 = arith.truncf %0 : vector<32x16xf32> to vector<32x16xbf16>
    %c0_1 = arith.constant 0 : index
    %c0_2 = arith.constant 0 : index
    %2 = vector.load %arg2[%c0_1, %c0_2] : memref<288x128xbf16, #tpu.memory_space<vmem>>, vector<16x128xbf16>
    %c16 = arith.constant 16 : index
    %c0_3 = arith.constant 0 : index
    %3 = vector.load %arg2[%c16, %c0_3] : memref<288x128xbf16, #tpu.memory_space<vmem>>, vector<128x128xbf16>
    %c144 = arith.constant 144 : index
    %c0_4 = arith.constant 0 : index
    %4 = vector.load %arg2[%c144, %c0_4] : memref<288x128xbf16, #tpu.memory_space<vmem>>, vector<128x128xbf16>
    %c272 = arith.constant 272 : index
    %c0_5 = arith.constant 0 : index
    %5 = vector.load %arg2[%c272, %c0_5] : memref<288x128xbf16, #tpu.memory_space<vmem>>, vector<1x128xbf16>
    %6 = arith.extf %5 : vector<1x128xbf16> to vector<1x128xf32>
    %cst = arith.constant dense<0.000000e+00> : vector<32x128xf32>
    %7 = tpu.matmul %1, %2, %cst {dimension_numbers = #tpu.dot_dimension_numbers<[1], [0], [0], [1], [0, 0, 1, 1], [], []>} : vector<32x16xbf16>, vector<16x128xbf16>, vector<32x128xf32> -> vector<32x128xf32>
    %8 = vector.broadcast %6 : vector<1x128xf32> to vector<32x128xf32>
    %9 = arith.addf %7, %8 : vector<32x128xf32>
    %cst_6 = arith.constant 0.000000e+00 : f32
    %10 = vector.broadcast %cst_6 : f32 to vector<32x128xf32>
    %11 = arith.maximumf %9, %10 : vector<32x128xf32>
    %12 = arith.truncf %11 : vector<32x128xf32> to vector<32x128xbf16>
    %cst_7 = arith.constant dense<0.000000e+00> : vector<32x128xf32>
    %13 = tpu.matmul %12, %3, %cst_7 {dimension_numbers = #tpu.dot_dimension_numbers<[1], [0], [0], [1], [0, 0, 1, 1], [], []>} : vector<32x128xbf16>, vector<128x128xbf16>, vector<32x128xf32> -> vector<32x128xf32>
    %cst_8 = arith.constant 0.000000e+00 : f32
    %14 = vector.broadcast %cst_8 : f32 to vector<32x128xf32>
    %15 = arith.maximumf %13, %14 : vector<32x128xf32>
    %16 = arith.truncf %15 : vector<32x128xf32> to vector<32x128xbf16>
    %cst_9 = arith.constant dense<0.000000e+00> : vector<32x128xf32>
    %17 = tpu.matmul %16, %4, %cst_9 {dimension_numbers = #tpu.dot_dimension_numbers<[1], [0], [0], [1], [0, 0, 1, 1], [], []>} : vector<32x128xbf16>, vector<128x128xbf16>, vector<32x128xf32> -> vector<32x128xf32>
    %c0_10 = arith.constant 0 : index
    %c0_11 = arith.constant 0 : index
    %18 = vector.load %arg3[%c0_10, %c0_11] : memref<32x128xf32, #tpu.memory_space<vmem>>, vector<32x128xf32>
    tpu.vector_store %arg3[%c0_10, %c0_11], %17 {strides = array<i32>} : memref<32x128xf32, #tpu.memory_space<vmem>>, vector<32x128xf32>,
    return
  }
  func.func @transform_0(%arg0: i32) -> (i32, i32) {
    %c0_i32 = arith.constant 0 : i32
    %c0_i32_0 = arith.constant 0 : i32
    return %arg0, %c0_i32 : i32, i32
  }
  func.func @transform_1(%arg0: i32) -> (i32, i32) {
    %c0_i32 = arith.constant 0 : i32
    %c0_i32_0 = arith.constant 0 : i32
    %c0_i32_1 = arith.constant 0 : i32
    return %c0_i32, %c0_i32_0 : i32, i32
  }
  func.func @transform_2(%arg0: i32) -> (i32, i32) {
    %c0_i32 = arith.constant 0 : i32
    %c0_i32_0 = arith.constant 0 : i32
    return %arg0, %c0_i32 : i32, i32
  }
}

</mosaic_0001>

<llo_original>
// kernel: parameter_generator_dynamic.1
$region0: #{parameter_generator_dynamic.1}
  #allocation0 [shape = 'u32[]', space=smem, size = 0x4, offset = 0x4, fixed_abs, tag = 'smem constant byte address 0x4 - core index']
  #allocation1 [shape = 'u32[144,128]{1,0:T(1,128)}', space=vmem, size = 0x12000, scoped, tag = 'internal scratch']
  %s0 = inlined_call_operand.hbm [shape: f32[32,16], index: 0, kind: input, shape index: {}]
  %s1 = inlined_call_operand.hbm [shape: bf16[288,128], index: 1, kind: input, shape index: {}]
  %s2 = inlined_call_operand.vmem [shape: f32[32,128], index: 2, kind: output, shape index: {}]
  %s3 = sld [smem:[#allocation0]]
  $region26: #{parameter_generator_dynamic.1} parent=0
    _
  %s5 = ssub.s32 1, %s3
  %s6 = scalar_select 0, %s5, %s3
  $region1: #{parameter_generator_dynamic.1} parent=0
    #allocation2 [shape = 'u8[16384]{0}', space=vmem, size = 0x4000, scoped, tag = 'input window, operand 0, single buffered']
    #allocation3 [shape = 's32[1]{0}', space=sflag, size = 0x4, scoped, tag = 'scoped memory for parameter_generator_dynamic.1']
    #allocation4 [shape = 'u8[73728]{0}', space=vmem, size = 0x12000, scoped, tag = 'input window, operand 1, single buffered']
    #allocation5 [shape = 's32[1]{0}', space=sflag, size = 0x4, scoped, tag = 'scoped memory for parameter_generator_dynamic.1']
    %7 = vsyncpa [#allocation3], 0
    %8 = vsyncpa [#allocation5], 0
    // Predicated region
    $region2: #{parameter_generator_dynamic.1} parent=1 // pred_check
      _
    $region3: #{parameter_generator_dynamic.1} parent=1 // pred_check_branch
      %10 = sbr.rel (0) target = $region5
    $region4: #{parameter_generator_dynamic.1} parent=1 // pred_region
      %s12 = ssub.s32 512, 512
      %13 = vsyncadd [#allocation3], %s12
      %s14 = sshll.u32 [#allocation2], 4
      %s15 = int_to_ptr.vmem [resolvable:$true] %s14
      %20 = dma.hbm_to_vmem [thread:$0]  %s0, 512, %s15, [#allocation3], 128, 128, 8
    $region5: #{parameter_generator_dynamic.1} parent=1 // pred_fallthru
      _
    // Predicated region
    $region6: #{parameter_generator_dynamic.1} parent=1 // pred_check
      _
    $region7: #{parameter_generator_dynamic.1} parent=1 // pred_check_branch
      %22 = sbr.rel (0) target = $region9
    $region8: #{parameter_generator_dynamic.1} parent=1 // pred_region
      %s24 = ssub.s32 2304, 2304
      %25 = vsyncadd [#allocation5], %s24
      %s26 = sshll.u32 [#allocation4], 4
      %s27 = int_to_ptr.vmem [resolvable:$true] %s26
      %32 = dma.hbm_to_vmem [thread:$0]  %s1, 2304, %s27, [#allocation5], 64, 64, 4
    $region9: #{parameter_generator_dynamic.1} parent=1 // pred_fallthru
      _
    // Predicated region
    $region10: #{parameter_generator_dynamic.1} parent=1 // pred_check
      _
    $region11: #{parameter_generator_dynamic.1} parent=1 // pred_check_branch
      %34 = sbr.rel (0) target = $region13
    $region12: #{parameter_generator_dynamic.1} parent=1 // pred_region
      %35 = dma.done [#allocation3], 512
    $region13: #{parameter_generator_dynamic.1} parent=1 // pred_fallthru
      _
    // Predicated region
    $region14: #{parameter_generator_dynamic.1} parent=1 // pred_check
      _
    $region15: #{parameter_generator_dynamic.1} parent=1 // pred_check_branch
      %37 = sbr.rel (0) target = $region17
    $region16: #{parameter_generator_dynamic.1} parent=1 // pred_region
      %38 = dma.done [#allocation5], 2304
    $region17: #{parameter_generator_dynamic.1} parent=1 // pred_fallthru
      _
    %v40 = vld [vmem:[#allocation2] sm:$0xff]
    %v41 = vld [vmem:[#allocation2 + $0x8] sm:$0xff]
    %v42 = vld [vmem:[#allocation2 + $0x10] sm:$0xff]
    %v43 = vld [vmem:[#allocation2 + $0x18] sm:$0xff]
    %v44 = vpack.c.bf16 %v41, %v40
    %v45 = vpack.c.bf16 %v43, %v42
    %v46 = vld [vmem:[#allocation4] sm:$0xf]
    %v47 = vld [vmem:[#allocation4 + $0x4] sm:$0xf]
    %v48 = vld [vmem:[#allocation4 + $0x8] sm:$0xf]
    %v49 = vld [vmem:[#allocation4 + $0xc] sm:$0xf]
    %v50 = vld [vmem:[#allocation4 + $0x10] sm:$0xf]
    %v51 = vld [vmem:[#allocation4 + $0x14] sm:$0xf]
    %v52 = vld [vmem:[#allocation4 + $0x18] sm:$0xf]
    %v53 = vld [vmem:[#allocation4 + $0x1c] sm:$0xf]
    %v54 = vld [vmem:[#allocation4 + $0x20] sm:$0xf]
    %v55 = vld [vmem:[#allocation4 + $0x24] sm:$0xf]
    %v56 = vld [vmem:[#allocation4 + $0x28] sm:$0xf]
    %v57 = vld [vmem:[#allocation4 + $0x2c] sm:$0xf]
    %v58 = vld [vmem:[#allocation4 + $0x30] sm:$0xf]
    %v59 = vld [vmem:[#allocation4 + $0x34] sm:$0xf]
    %v60 = vld [vmem:[#allocation4 + $0x38] sm:$0xf]
    %v61 = vld [vmem:[#allocation4 + $0x3c] sm:$0xf]
    %v62 = vld [vmem:[#allocation4 + $0x40] sm:$0xf]
    %v63 = vld [vmem:[#allocation4 + $0x44] sm:$0xf]
    %v64 = vld [vmem:[#allocation4 + $0x48] sm:$0xf]
    %v65 = vld [vmem:[#allocation4 + $0x4c] sm:$0xf]
    %v66 = vld [vmem:[#allocation4 + $0x50] sm:$0xf]
    %v67 = vld [vmem:[#allocation4 + $0x54] sm:$0xf]
    %v68 = vld [vmem:[#allocation4 + $0x58] sm:$0xf]
    %v69 = vld [vmem:[#allocation4 + $0x5c] sm:$0xf]
    %v70 = vld [vmem:[#allocation4 + $0x60] sm:$0xf]
    %v71 = vld [vmem:[#allocation4 + $0x64] sm:$0xf]
    %v72 = vld [vmem:[#allocation4 + $0x68] sm:$0xf]
    %v73 = vld [vmem:[#allocation4 + $0x6c] sm:$0xf]
    %v74 = vld [vmem:[#allocation4 + $0x70] sm:$0xf]
    %v75 = vld [vmem:[#allocation4 + $0x74] sm:$0xf]
    %v76 = vld [vmem:[#allocation4 + $0x78] sm:$0xf]
    %v77 = vld [vmem:[#allocation4 + $0x7c] sm:$0xf]
    %v78 = vld [vmem:[#allocation4 + $0x80] sm:$0xf]
    %v79 = vld [vmem:[#allocation4 + $0x84] sm:$0xf]
    %v80 = vld [vmem:[#allocation4 + $0x88] sm:$0x1]
    %v81 = vunpack.c.l.bf16 %v80
    %v82 = vlaneseq
    %v83 = vshrl.u32 %v82, 7
    %v84 = vsub.s32 0, %v83
    %v85 = vrot.slane %v81, %v84
    %v88 = vunpack.c.l.b16 %v46
    %v89 = vunpack.c.l.b16 %v47
    %v90 = vpack.c.b16 %v89, %v88
    %vm92 = vcmask 130048
    %v94 = vsel %vm92, %v44, 0
    %v97 = vsel %vm92, %v45, 0
    %99 = vmatprep.subr.bf16.mxu0 0
    %100 = vmatpush1.bf16.msra.mxu0 %v90
    %101 = vmatprep.subr.bf16.mxu0 0
    %102 = vmatpush1.bf16.msra.mxu0 0
    %103 = vmatprep.subr.bf16.mxu0 0
    %104 = vmatpush1.bf16.msra.mxu0 0
    %105 = vmatprep.subr.bf16.mxu0 0
    %106 = vmatpush1.bf16.msra.mxu0 0
    %107 = vmatprep.subr.bf16.mxu0 0
    %108 = vmatpush1.bf16.msra.mxu0 0
    %109 = vmatprep.subr.bf16.mxu0 0
    %110 = vmatpush1.bf16.msra.mxu0 0
    %111 = vmatprep.subr.bf16.mxu0 0
    %112 = vmatpush1.bf16.msra.mxu0 0
    %113 = vmatprep.subr.bf16.mxu0 0
    %114 = vmatpush1.bf16.msra.mxu0 0
    %115 = vmatprep.subr.bf16.mxu0 0
    %116 = vmatpush1.bf16.msra.mxu0 0
    %117 = vmatprep.subr.bf16.mxu0 0
    %118 = vmatpush1.bf16.msra.mxu0 0
    %119 = vmatprep.subr.bf16.mxu0 0
    %120 = vmatpush1.bf16.msra.mxu0 0
    %121 = vmatprep.subr.bf16.mxu0 0
    %122 = vmatpush1.bf16.msra.mxu0 0
    %123 = vmatprep.subr.bf16.mxu0 0
    %124 = vmatpush1.bf16.msra.mxu0 0
    %125 = vmatprep.subr.bf16.mxu0 0
    %126 = vmatpush1.bf16.msra.mxu0 0
    %127 = vmatprep.subr.bf16.mxu0 0
    %128 = vmatpush1.bf16.msra.mxu0 0
    %129 = vmatprep.subr.bf16.mxu0 0
    %130 = vmatpush1.bf16.msra.mxu0 0
    %131 = vmatprep.mubr.bf16.mxu0 0
    %132 = vmatmul.mubr.bf16.gmra.mrb[0].mxu0 %v94
    %v133 = vpop.f32.mrb[0].mxu0
    %v134 = vadd.f32 %v85, %v133
    %v135 = vpop.f32.mrb[0].mxu0
    %v136 = vpop.f32.mrb[0].mxu0
    %v137 = vadd.f32 %v85, %v136
    %v138 = vpop.f32.mrb[0].mxu0
    %139 = vmatprep.mubr.bf16.mxu0 0
    %140 = vmatmul.mubr.bf16.gmra.mrb[0].mxu0 %v97
    %v141 = vpop.f32.mrb[0].mxu0
    %v142 = vadd.f32 %v85, %v141
    %v143 = vpop.f32.mrb[0].mxu0
    %v144 = vpop.f32.mrb[0].mxu0
    %v145 = vadd.f32 %v85, %v144
    %v146 = vpop.f32.mrb[0].mxu0
    %147 = vdwg.mxu0
    %v148 = vmax.f32 %v134, 0.0
    %v149 = vmax.f32 %v137, 0.0
    %v150 = vmax.f32 %v142, 0.0
    %v151 = vmax.f32 %v145, 0.0
    %v152 = vpack.c.bf16 %v149, %v148
    %v153 = vpack.c.bf16 %v151, %v150
    %v170 = vunpack.c.l.b16 %v48
    %v171 = vunpack.c.l.b16 %v49
    %v172 = vunpack.c.l.b16 %v50
    %v173 = vunpack.c.l.b16 %v51
    %v174 = vunpack.c.l.b16 %v52
    %v175 = vunpack.c.l.b16 %v53
    %v176 = vunpack.c.l.b16 %v54
    %v177 = vunpack.c.l.b16 %v55
    %v178 = vunpack.c.l.b16 %v56
    %v179 = vunpack.c.l.b16 %v57
    %v180 = vunpack.c.l.b16 %v58
    %v181 = vunpack.c.l.b16 %v59
    %v182 = vunpack.c.l.b16 %v60
    %v183 = vunpack.c.l.b16 %v61
    %v184 = vunpack.c.l.b16 %v62
    %v185 = vunpack.c.l.b16 %v63
    %v186 = vpack.c.b16 %v171, %v170
    %v187 = vpack.c.b16 %v173, %v172
    %v188 = vpack.c.b16 %v175, %v174
    %v189 = vpack.c.b16 %v177, %v176
    %v190 = vpack.c.b16 %v179, %v178
    %v191 = vpack.c.b16 %v181, %v180
    %v192 = vpack.c.b16 %v183, %v182
    %v193 = vpack.c.b16 %v185, %v184
    %202 = vmatprep.subr.bf16.mxu0 0
    %203 = vmatpush1.bf16.msra.mxu0 %v186
    %204 = vmatprep.subr.bf16.mxu0 0
    %205 = vmatpush1.bf16.msra.mxu0 %v187
    %206 = vmatprep.subr.bf16.mxu0 0
    %207 = vmatpush1.bf16.msra.mxu0 %v188
    %208 = vmatprep.subr.bf16.mxu0 0
    %209 = vmatpush1.bf16.msra.mxu0 %v189
    %210 = vmatprep.subr.bf16.mxu0 0
    %211 = vmatpush1.bf16.msra.mxu0 %v190
    %212 = vmatprep.subr.bf16.mxu0 0
    %213 = vmatpush1.bf16.msra.mxu0 %v191
    %214 = vmatprep.subr.bf16.mxu0 0
    %215 = vmatpush1.bf16.msra.mxu0 %v192
    %216 = vmatprep.subr.bf16.mxu0 0
    %217 = vmatpush1.bf16.msra.mxu0 %v193
    %218 = vmatprep.subr.bf16.mxu0 0
    %219 = vmatpush1.bf16.msra.mxu0 0
    %220 = vmatprep.subr.bf16.mxu0 0
    %221 = vmatpush1.bf16.msra.mxu0 0
    %222 = vmatprep.subr.bf16.mxu0 0
    %223 = vmatpush1.bf16.msra.mxu0 0
    %224 = vmatprep.subr.bf16.mxu0 0
    %225 = vmatpush1.bf16.msra.mxu0 0
    %226 = vmatprep.subr.bf16.mxu0 0
    %227 = vmatpush1.bf16.msra.mxu0 0
    %228 = vmatprep.subr.bf16.mxu0 0
    %229 = vmatpush1.bf16.msra.mxu0 0
    %230 = vmatprep.subr.bf16.mxu0 0
    %231 = vmatpush1.bf16.msra.mxu0 0
    %232 = vmatprep.subr.bf16.mxu0 0
    %233 = vmatpush1.bf16.msra.mxu0 0
    %234 = vmatprep.mubr.bf16.mxu0 0
    %235 = vmatmul.mubr.bf16.gmra.mrb[0].mxu0 %v152
    %v236 = vpop.f32.mrb[0].mxu0
    %v237 = vadd.f32 0.0, %v236
    %v238 = vpop.f32.mrb[0].mxu0
    %v239 = vpop.f32.mrb[0].mxu0
    %v240 = vadd.f32 0.0, %v239
    %v241 = vpop.f32.mrb[0].mxu0
    %242 = vmatprep.mubr.bf16.mxu0 0
    %243 = vmatmul.mubr.bf16.gmra.mrb[0].mxu0 %v153
    %v244 = vpop.f32.mrb[0].mxu0
    %v245 = vadd.f32 0.0, %v244
    %v246 = vpop.f32.mrb[0].mxu0
    %v247 = vpop.f32.mrb[0].mxu0
    %v248 = vadd.f32 0.0, %v247
    %v249 = vpop.f32.mrb[0].mxu0
    %250 = vdwg.mxu0
    %v251 = vmax.f32 %v237, 0.0
    %v252 = vmax.f32 %v240, 0.0
    %v253 = vmax.f32 %v245, 0.0
    %v254 = vmax.f32 %v248, 0.0
    %v255 = vpack.c.bf16 %v252, %v251
    %v256 = vpack.c.bf16 %v254, %v253
    %v273 = vunpack.c.l.b16 %v64
    %v274 = vunpack.c.l.b16 %v65
    %v275 = vunpack.c.l.b16 %v66
    %v276 = vunpack.c.l.b16 %v67
    %v277 = vunpack.c.l.b16 %v68
    %v278 = vunpack.c.l.b16 %v69
    %v279 = vunpack.c.l.b16 %v70
    %v280 = vunpack.c.l.b16 %v71
    %v281 = vunpack.c.l.b16 %v72
    %v282 = vunpack.c.l.b16 %v73
    %v283 = vunpack.c.l.b16 %v74
    %v284 = vunpack.c.l.b16 %v75
    %v285 = vunpack.c.l.b16 %v76
    %v286 = vunpack.c.l.b16 %v77
    %v287 = vunpack.c.l.b16 %v78
    %v288 = vunpack.c.l.b16 %v79
    %v289 = vpack.c.b16 %v274, %v273
    %v290 = vpack.c.b16 %v276, %v275
    %v291 = vpack.c.b16 %v278, %v277
    %v292 = vpack.c.b16 %v280, %v279
    %v293 = vpack.c.b16 %v282, %v281
    %v294 = vpack.c.b16 %v284, %v283
    %v295 = vpack.c.b16 %v286, %v285
    %v296 = vpack.c.b16 %v288, %v287
    %305 = vmatprep.subr.bf16.mxu0 0
    %306 = vmatpush1.bf16.msra.mxu0 %v289
    %307 = vmatprep.subr.bf16.mxu0 0
    %308 = vmatpush1.bf16.msra.mxu0 %v290
    %309 = vmatprep.subr.bf16.mxu0 0
    %310 = vmatpush1.bf16.msra.mxu0 %v291
    %311 = vmatprep.subr.bf16.mxu0 0
    %312 = vmatpush1.bf16.msra.mxu0 %v292
    %313 = vmatprep.subr.bf16.mxu0 0
    %314 = vmatpush1.bf16.msra.mxu0 %v293
    %315 = vmatprep.subr.bf16.mxu0 0
    %316 = vmatpush1.bf16.msra.mxu0 %v294
    %317 = vmatprep.subr.bf16.mxu0 0
    %318 = vmatpush1.bf16.msra.mxu0 %v295
    %319 = vmatprep.subr.bf16.mxu0 0
    %320 = vmatpush1.bf16.msra.mxu0 %v296
    %321 = vmatprep.subr.bf16.mxu0 0
    %322 = vmatpush1.bf16.msra.mxu0 0
    %323 = vmatprep.subr.bf16.mxu0 0
    %324 = vmatpush1.bf16.msra.mxu0 0
    %325 = vmatprep.subr.bf16.mxu0 0
    %326 = vmatpush1.bf16.msra.mxu0 0
    %327 = vmatprep.subr.bf16.mxu0 0
    %328 = vmatpush1.bf16.msra.mxu0 0
    %329 = vmatprep.subr.bf16.mxu0 0
    %330 = vmatpush1.bf16.msra.mxu0 0
    %331 = vmatprep.subr.bf16.mxu0 0
    %332 = vmatpush1.bf16.msra.mxu0 0
    %333 = vmatprep.subr.bf16.mxu0 0
    %334 = vmatpush1.bf16.msra.mxu0 0
    %335 = vmatprep.subr.bf16.mxu0 0
    %336 = vmatpush1.bf16.msra.mxu0 0
    %337 = vmatprep.mubr.bf16.mxu0 0
    %338 = vmatmul.mubr.bf16.gmra.mrb[0].mxu0 %v255
    %v339 = vpop.f32.mrb[0].mxu0
    %v340 = vadd.f32 0.0, %v339
    %v341 = vpop.f32.mrb[0].mxu0
    %v342 = vpop.f32.mrb[0].mxu0
    %v343 = vadd.f32 0.0, %v342
    %v344 = vpop.f32.mrb[0].mxu0
    %345 = vmatprep.mubr.bf16.mxu0 0
    %346 = vmatmul.mubr.bf16.gmra.mrb[0].mxu0 %v256
    %v347 = vpop.f32.mrb[0].mxu0
    %v348 = vadd.f32 0.0, %v347
    %v349 = vpop.f32.mrb[0].mxu0
    %v350 = vpop.f32.mrb[0].mxu0
    %v351 = vadd.f32 0.0, %v350
    %v352 = vpop.f32.mrb[0].mxu0
    %353 = vdwg.mxu0
    %354 = vst [vmem:[%s2] sm:$0xff] %v340
    %355 = vst [vmem:[%s2 + $0x8] sm:$0xff] %v343
    %356 = vst [vmem:[%s2 + $0x10] sm:$0xff] %v348
    %357 = vst [vmem:[%s2 + $0x18] sm:$0xff] %v351
    // Predicated region
    $region18: #{parameter_generator_dynamic.1} parent=1 // pred_check
      _
    $region19: #{parameter_generator_dynamic.1} parent=1 // pred_check_branch
      %359 = sbr.rel (0) target = $region21
    $region20: #{parameter_generator_dynamic.1} parent=1 // pred_region
      _
    $region21: #{parameter_generator_dynamic.1} parent=1 // pred_fallthru
      _
    // Predicated region
    $region22: #{parameter_generator_dynamic.1} parent=1 // pred_check
      _
    $region23: #{parameter_generator_dynamic.1} parent=1 // pred_check_branch
      %361 = sbr.rel (0) target = $region25
    $region24: #{parameter_generator_dynamic.1} parent=1 // pred_region
      _
    $region25: #{parameter_generator_dynamic.1} parent=1 // pred_fallthru
      _
    %362 = vsyncpa [#allocation3], 1
    %363 = vsyncpa [#allocation5], 1

</llo_original>
